<compile_context>
chip_gen: v7x
topology: tpu7x:2x2x1
jax: 0.10.0
libtpu: 0.0.40
codegen_flags: <defaults>
</compile_context>

<pallas_src>
import functools

import jax
import jax.numpy as jnp
from jax.experimental import pallas as pl
from jax.experimental.pallas import tpu as pltpu

BN_EPS = 1e-5


def _round_up(a, m):
    return (a + m - 1) // m * m


def _vmem_capacity_bytes():
    try:
        return int(pltpu.get_tpu_info().vmem_capacity_bytes)
    except Exception:
        return 64 << 20  # v7x-safe lower bound


def _down_to_128(v):
    return max(128, (v // 128) * 128)


def _plan(n, k, c_out, *, elem_itemsize, block_cout=256, block_k=512, sublane=16):
    """Derive padded sizes + tile sizes that fit the chip's VMEM budget."""
    n_pad = _round_up(max(n, 1), sublane)
    c128 = _round_up(c_out, 128)

    t_cout = min(block_cout, c128)
    # Keep >= 2 lane-dense output tiles when possible (v7x has 2 TensorCores).
    if c128 >= 256 and c128 // t_cout < 2:
        t_cout = _round_up(c128 // 2, 128)

    t_k = min(block_k, _round_up(max(k, 1), 128))

    cap = _vmem_capacity_bytes()
    budget = int(0.7 * cap)

    def footprint(tk, tc):
        return (2 * n_pad * tk * elem_itemsize    # x double-buffer
                + 2 * tk * tc * elem_itemsize     # W^T double-buffer
                + 2 * n_pad * tc * 4              # f32 output block (resident)
                + 4 * tc * 4)                     # gamma / beta

    while footprint(t_k, t_cout) > budget and t_k > 128:
        t_k = _down_to_128(t_k // 2)
    while footprint(t_k, t_cout) > budget and t_cout > 128:
        t_cout = _down_to_128(t_cout // 2)

    k_pad = _round_up(max(k, 1), t_k)
    c_pad = _round_up(c_out, t_cout)
    vmem_limit = min(max(footprint(t_k, t_cout) + (8 << 20), 32 << 20), cap)
    return dict(n_pad=n_pad, t_k=t_k, k_pad=k_pad, t_cout=t_cout, c_pad=c_pad,
                vmem_limit=int(vmem_limit))


def fc_kernel(x_ref, w_ref, gamma_ref, beta_ref, o_ref, *, true_n):
    """Grid = (C_out tiles [parallel], K tiles [arbitrary reduction]).

    The output block is resident across k (index_map independent of k), so it
    doubles as the f32 accumulator — no VMEM scratch needed.
    """
    k = pl.program_id(1)

    @pl.when(k == 0)
    def _():
        o_ref[...] = jnp.zeros_like(o_ref)

    # Linear: accumulate x @ W^T over K (W stored pre-transposed (K, C_out)).
    o_ref[...] += jnp.dot(x_ref[...], w_ref[...], preferred_element_type=jnp.float32)

    @pl.when(k == pl.num_programs(1) - 1)
    def _():
        y = o_ref[...]                                  # (n_pad, t_cout) f32
        inv_n = 1.0 / true_n                            # static true batch size
        # One-pass batch statistics; padded rows are exactly zero (bias folded out),
        # so sums over the padded batch equal sums over the real batch.
        s1 = jnp.sum(y, axis=0, keepdims=True)          # XLU column reduce
        s2 = jnp.sum(y * y, axis=0, keepdims=True)
        mean = s1 * inv_n
        var = jnp.maximum(s2 * inv_n - mean * mean, 0.0)    # biased (training) var
        inv_std = jax.lax.rsqrt(var + BN_EPS)           # EUP slot
        scale = gamma_ref[...] * inv_std                # (1, t_cout)
        shift = beta_ref[...] - mean * scale
        o_ref[...] = jnp.maximum(y * scale + shift, 0.0).astype(o_ref.dtype)


def prepare_fc_params(w_t, gamma, beta, batch_size, *, matmul_dtype=jnp.bfloat16,
                      block_cout=256, block_k=512):
    """Pad + cast the persistent operands ONCE (outside the per-call hot path).

    w_t: (C_in, C_out) = PyTorch Linear weight transposed.  The Linear bias is
    intentionally omitted — it cancels exactly under training-mode BatchNorm.
    """
    K, C_out = w_t.shape
    itemsize = jnp.dtype(matmul_dtype).itemsize if matmul_dtype is not None else 4
    sublane = 16 if itemsize == 2 else 8
    plan = _plan(batch_size, K, C_out, elem_itemsize=itemsize,
                 block_cout=block_cout, block_k=block_k, sublane=sublane)
    plan.update(N=int(batch_size), K=int(K), C_out=int(C_out), matmul_dtype=matmul_dtype)

    w_p = jnp.pad(w_t, ((0, plan["k_pad"] - K), (0, plan["c_pad"] - C_out)))
    if matmul_dtype is not None:
        w_p = w_p.astype(matmul_dtype)
    gamma_p = jnp.pad(jnp.reshape(gamma, (1, C_out)),
                      ((0, 0), (0, plan["c_pad"] - C_out)), constant_values=1.0)
    beta_p = jnp.pad(jnp.reshape(beta, (1, C_out)),
                     ((0, 0), (0, plan["c_pad"] - C_out)))
    return (w_p, gamma_p, beta_p), plan


def fc_forward(x, prepared, plan):
    """x: (N, C_in) f32.  Returns (N, C_out) f32 = ReLU(BN_train(Linear(x)))."""
    w_p, gamma_p, beta_p = prepared
    N, K = x.shape
    assert N == plan["N"] and K == plan["K"], "x shape does not match prepared plan"
    n_pad, k_pad = plan["n_pad"], plan["k_pad"]
    t_k, t_cout, c_pad = plan["t_k"], plan["t_cout"], plan["c_pad"]

    # Only touch x if it actually needs padding / casting.
    if (n_pad, k_pad) != (N, K):
        x = jnp.pad(x, ((0, n_pad - N), (0, k_pad - K)))
    md = plan["matmul_dtype"]
    if md is not None and x.dtype != jnp.dtype(md):
        x = x.astype(md)

    grid = (c_pad // t_cout, k_pad // t_k)

    cost = pl.CostEstimate(
        flops=2 * n_pad * k_pad * c_pad + 8 * n_pad * c_pad,
        transcendentals=c_pad,
        bytes_accessed=(x.size * x.dtype.itemsize
                        + w_p.size * w_p.dtype.itemsize
                        + 2 * c_pad * 4
                        + n_pad * c_pad * 4),
    )

    out = pl.pallas_call(
        functools.partial(fc_kernel, true_n=N),
        out_shape=jax.ShapeDtypeStruct((n_pad, c_pad), jnp.float32),
        grid_spec=pltpu.PrefetchScalarGridSpec(
            num_scalar_prefetch=0,
            grid=grid,
            in_specs=[
                pl.BlockSpec((n_pad, t_k), lambda j, k: (0, k)),      # x tile
                pl.BlockSpec((t_k, t_cout), lambda j, k: (k, j)),     # W^T tile (streamed)
                pl.BlockSpec((1, t_cout), lambda j, k: (0, j)),       # gamma (k-resident)
                pl.BlockSpec((1, t_cout), lambda j, k: (0, j)),       # beta  (k-resident)
            ],
            out_specs=pl.BlockSpec((n_pad, t_cout), lambda j, k: (0, j)),
        ),
        compiler_params=pltpu.CompilerParams(
            dimension_semantics=("parallel", "arbitrary"),
            vmem_limit_bytes=plan["vmem_limit"],
        ),
        cost_estimate=cost,
    )(x, w_p, gamma_p, beta_p)

    if (n_pad, c_pad) != (N, plan["C_out"]):
        out = out[:N, :plan["C_out"]]
    return out


def init_fc_params(key, input_channels, output_channels):
    """Deterministic init mimicking PyTorch defaults (Linear + BatchNorm1d)."""
    kw, kb = jax.random.split(key)
    bound = 1.0 / jnp.sqrt(input_channels)
    # PyTorch Linear weight is (C_out, C_in); keep it transposed (C_in, C_out).
    w_t = jax.random.uniform(
        kw, (input_channels, output_channels), jnp.float32, -bound, bound)
    b = jax.random.uniform(kb, (1, output_channels), jnp.float32, -bound, bound)
    gamma = jnp.ones((1, output_channels), jnp.float32)   # BN weight init = 1
    beta = jnp.zeros((1, output_channels), jnp.float32)   # BN bias init = 0
    return w_t, b, gamma, beta


if __name__ == "__main__":
    key = jax.random.PRNGKey(0)
    k_x, k_p = jax.random.split(key)

    N, C_in, C_out = 8, 32, 64
    x = jax.random.normal(k_x, (N, C_in), jnp.float32)
    w_t, b, gamma, beta = init_fc_params(k_p, C_in, C_out)

    # Persistent (pad + cast once) weight-side prep, then the per-call kernel.
    prepared, plan = prepare_fc_params(w_t, gamma, beta, batch_size=N)
    out = fc_forward(x, prepared, plan)
    jax.block_until_ready(out)

    # Pure-JAX reference *including* the linear bias: training-mode BN cancels it,
    # so the bias-free kernel must match.  Use the same bf16 matmul / f32 accumulate
    # as the kernel so only the BN-stats formulation differs.
    y = jnp.dot(x.astype(jnp.bfloat16), w_t.astype(jnp.bfloat16),
                preferred_element_type=jnp.float32) + b
    mean = y.mean(axis=0, keepdims=True)
    var = ((y - mean) ** 2).mean(axis=0, keepdims=True)
    ref = jnp.maximum(gamma * (y - mean) / jnp.sqrt(var + BN_EPS) + beta, 0.0)

    assert out.shape == (N, C_out)
    assert jnp.allclose(out, ref, atol=1e-3, rtol=1e-3), \
        float(jnp.max(jnp.abs(out - ref)))

    print("KERNEL_OK")
</pallas_src>

<mosaic_0001>
module attributes {stable_mosaic.version = 11 : i64} {
  func.func @fc_kernel(%arg0: i32, %arg1: i32, %arg2: memref<16x128xbf16, #tpu.memory_space<vmem>>, %arg3: memref<128x128xbf16, #tpu.memory_space<vmem>>, %arg4: memref<1x128xf32, #tpu.memory_space<vmem>>, %arg5: memref<1x128xf32, #tpu.memory_space<vmem>>, %arg6: memref<16x128xf32, #tpu.memory_space<vmem>>) attributes {dimension_semantics = [#tpu.dimension_semantics<parallel>, #tpu.dimension_semantics<arbitrary>], iteration_bounds = array<i64: 1, 1>, scalar_prefetch = 0 : i64, scratch_operands = 0 : i64, tpu.core_type = #tpu.core_type<tc>, window_params = [{transform_indices = @transform_0, window_bounds = array<i64: 16, 128>}, {transform_indices = @transform_1, window_bounds = array<i64: 128, 128>}, {transform_indices = @transform_2, window_bounds = array<i64: 1, 128>}, {transform_indices = @transform_3, window_bounds = array<i64: 1, 128>}, {transform_indices = @transform_4, window_bounds = array<i64: 16, 128>}]} {
    %c0_i32 = arith.constant 0 : i32
    %0 = arith.cmpi eq, %arg1, %c0_i32 : i32
    %1 = arith.extui %0 : i1 to i32
    %c0_i32_0 = arith.constant 0 : i32
    %2 = arith.cmpi ne, %1, %c0_i32_0 : i32
    scf.if %2 {
      %cst_10 = arith.constant 0.000000e+00 : f32
      %12 = vector.broadcast %cst_10 : f32 to vector<16x128xf32>
      %c0_11 = arith.constant 0 : index
      %c0_12 = arith.constant 0 : index
      %13 = vector.load %arg6[%c0_11, %c0_12] : memref<16x128xf32, #tpu.memory_space<vmem>>, vector<16x128xf32>
      tpu.vector_store %arg6[%c0_11, %c0_12], %12 {strides = array<i32>} : memref<16x128xf32, #tpu.memory_space<vmem>>, vector<16x128xf32>,
    } else {
    }
    %c0 = arith.constant 0 : index
    %c0_1 = arith.constant 0 : index
    %3 = vector.load %arg6[%c0, %c0_1] : memref<16x128xf32, #tpu.memory_space<vmem>>, vector<16x128xf32>
    %c0_2 = arith.constant 0 : index
    %c0_3 = arith.constant 0 : index
    %4 = vector.load %arg2[%c0_2, %c0_3] : memref<16x128xbf16, #tpu.memory_space<vmem>>, vector<16x128xbf16>
    %c0_4 = arith.constant 0 : index
    %c0_5 = arith.constant 0 : index
    %5 = vector.load %arg3[%c0_4, %c0_5] : memref<128x128xbf16, #tpu.memory_space<vmem>>, vector<128x128xbf16>
    %cst = arith.constant dense<0.000000e+00> : vector<16x128xf32>
    %6 = tpu.matmul %4, %5, %cst {dimension_numbers = #tpu.dot_dimension_numbers<[1], [0], [0], [1], [0, 0, 1, 1], [], []>} : vector<16x128xbf16>, vector<128x128xbf16>, vector<16x128xf32> -> vector<16x128xf32>
    %7 = arith.addf %3, %6 : vector<16x128xf32>
    %c0_6 = arith.constant 0 : index
    %c0_7 = arith.constant 0 : index
    %8 = vector.load %arg6[%c0_6, %c0_7] : memref<16x128xf32, #tpu.memory_space<vmem>>, vector<16x128xf32>
    tpu.vector_store %arg6[%c0_6, %c0_7], %7 {strides = array<i32>} : memref<16x128xf32, #tpu.memory_space<vmem>>, vector<16x128xf32>,
    %c0_i32_8 = arith.constant 0 : i32
    %9 = arith.cmpi eq, %arg1, %c0_i32_8 : i32
    %10 = arith.extui %9 : i1 to i32
    %c0_i32_9 = arith.constant 0 : i32
    %11 = arith.cmpi ne, %10, %c0_i32_9 : i32
    scf.if %11 {
      %c0_10 = arith.constant 0 : index
      %c0_11 = arith.constant 0 : index
      %12 = vector.load %arg6[%c0_10, %c0_11] : memref<16x128xf32, #tpu.memory_space<vmem>>, vector<16x128xf32>
      %cst_12 = arith.constant dense<0.000000e+00> : vector<128xf32>
      %13 = vector.multi_reduction <add>, %12, %cst_12 [0] : vector<16x128xf32> to vector<128xf32>
      %14 = vector.shape_cast %13 : vector<128xf32> to vector<1x128xf32>
      %15 = arith.mulf %12, %12 : vector<16x128xf32>
      %cst_13 = arith.constant dense<0.000000e+00> : vector<128xf32>
      %16 = vector.multi_reduction <add>, %15, %cst_13 [0] : vector<16x128xf32> to vector<128xf32>
      %17 = vector.shape_cast %16 : vector<128xf32> to vector<1x128xf32>
      %cst_14 = arith.constant 1.250000e-01 : f32
      %18 = vector.broadcast %cst_14 : f32 to vector<1x128xf32>
      %19 = arith.mulf %14, %18 : vector<1x128xf32>
      %cst_15 = arith.constant 1.250000e-01 : f32
      %20 = vector.broadcast %cst_15 : f32 to vector<1x128xf32>
      %21 = arith.mulf %17, %20 : vector<1x128xf32>
      %22 = arith.mulf %19, %19 : vector<1x128xf32>
      %23 = arith.subf %21, %22 : vector<1x128xf32>
      %cst_16 = arith.constant 0.000000e+00 : f32
      %24 = vector.broadcast %cst_16 : f32 to vector<1x128xf32>
      %25 = arith.maximumf %23, %24 : vector<1x128xf32>
      %cst_17 = arith.constant 9.99999974E-6 : f32
      %26 = vector.broadcast %cst_17 : f32 to vector<1x128xf32>
      %27 = arith.addf %25, %26 : vector<1x128xf32>
      %28 = math.rsqrt %27 : vector<1x128xf32>
      %c0_18 = arith.constant 0 : index
      %c0_19 = arith.constant 0 : index
      %29 = vector.load %arg4[%c0_18, %c0_19] : memref<1x128xf32, #tpu.memory_space<vmem>>, vector<1x128xf32>
      %30 = arith.mulf %29, %28 : vector<1x128xf32>
      %c0_20 = arith.constant 0 : index
      %c0_21 = arith.constant 0 : index
      %31 = vector.load %arg5[%c0_20, %c0_21] : memref<1x128xf32, #tpu.memory_space<vmem>>, vector<1x128xf32>
      %32 = arith.mulf %19, %30 : vector<1x128xf32>
      %33 = arith.subf %31, %32 : vector<1x128xf32>
      %34 = vector.broadcast %30 : vector<1x128xf32> to vector<16x128xf32>
      %35 = arith.mulf %12, %34 : vector<16x128xf32>
      %36 = vector.broadcast %33 : vector<1x128xf32> to vector<16x128xf32>
      %37 = arith.addf %35, %36 : vector<16x128xf32>
      %cst_22 = arith.constant 0.000000e+00 : f32
      %38 = vector.broadcast %cst_22 : f32 to vector<16x128xf32>
      %39 = arith.maximumf %37, %38 : vector<16x128xf32>
      %c0_23 = arith.constant 0 : index
      %c0_24 = arith.constant 0 : index
      %40 = vector.load %arg6[%c0_23, %c0_24] : memref<16x128xf32, #tpu.memory_space<vmem>>, vector<16x128xf32>
      tpu.vector_store %arg6[%c0_23, %c0_24], %39 {strides = array<i32>} : memref<16x128xf32, #tpu.memory_space<vmem>>, vector<16x128xf32>,
    } else {
    }
    return
  }
  func.func @transform_0(%arg0: i32, %arg1: i32) -> (i32, i32) {
    %c0_i32 = arith.constant 0 : i32
    %c0_i32_0 = arith.constant 0 : i32
    return %c0_i32, %arg1 : i32, i32
  }
  func.func @transform_1(%arg0: i32, %arg1: i32) -> (i32, i32) {
    %c0_i32 = arith.constant 0 : i32
    return %arg1, %arg0 : i32, i32
  }
  func.func @transform_2(%arg0: i32, %arg1: i32) -> (i32, i32) {
    %c0_i32 = arith.constant 0 : i32
    %c0_i32_0 = arith.constant 0 : i32
    return %c0_i32, %arg0 : i32, i32
  }
  func.func @transform_3(%arg0: i32, %arg1: i32) -> (i32, i32) {
    %c0_i32 = arith.constant 0 : i32
    %c0_i32_0 = arith.constant 0 : i32
    return %c0_i32, %arg0 : i32, i32
  }
  func.func @transform_4(%arg0: i32, %arg1: i32) -> (i32, i32) {
    %c0_i32 = arith.constant 0 : i32
    %c0_i32_0 = arith.constant 0 : i32
    return %c0_i32, %arg0 : i32, i32
  }
}

</mosaic_0001>

<llo_original>
// kernel: tpu_custom_call.1
$region0: #{tpu_custom_call.1}
  #allocation0 [shape = 'u32[]', space=smem, size = 0x4, offset = 0x4, fixed_abs, tag = 'smem constant byte address 0x4 - core index']
  #allocation1 [shape = 'u32[144,128]{1,0:T(1,128)}', space=vmem, size = 0x12000, scoped, tag = 'internal scratch']
  %s0 = inlined_call_operand.hbm [shape: bf16[16,128], index: 0, kind: input, shape index: {}]
  %s1 = inlined_call_operand.hbm [shape: bf16[128,128], index: 1, kind: input, shape index: {}]
  %s2 = inlined_call_operand.vmem [shape: f32[1,128], index: 2, kind: input, shape index: {}]
  %s3 = inlined_call_operand.vmem [shape: f32[1,128], index: 3, kind: input, shape index: {}]
  %s4 = inlined_call_operand.hbm [shape: f32[16,128], index: 4, kind: output, shape index: {}]
  %s5 = sld [smem:[#allocation0]]
  $region42: #{tpu_custom_call.1} parent=0
    _
  %s7 = ssub.s32 1, %s5
  %s8 = scalar_select 0, %s7, %s5
  $region1: #{tpu_custom_call.1} parent=0
    #allocation2 [shape = 'u8[4096]{0}', space=vmem, size = 0x1000, scoped, tag = 'input window, operand 0, single buffered']
    #allocation3 [shape = 's32[1]{0}', space=sflag, size = 0x4, scoped, tag = 'scoped memory for tpu_custom_call.1']
    #allocation4 [shape = 's32[1]{0}', space=sflag, size = 0x4, scoped, tag = 'scoped memory for tpu_custom_call.1']
    #allocation5 [shape = 'u8[32768]{0}', space=vmem, size = 0x8000, scoped, tag = 'input window, operand 1, single buffered']
    #allocation6 [shape = 's32[1]{0}', space=sflag, size = 0x4, scoped, tag = 'scoped memory for tpu_custom_call.1']
    #allocation7 [shape = 'u8[8192]{0}', space=vmem, size = 0x2000, scoped, tag = 'output window, operand 0, single buffered']
    %9 = vsyncpa [#allocation3], 0
    %10 = vsyncpa [#allocation6], 0
    %11 = vsyncpa [#allocation4], 0
    // Predicated region
    $region2: #{tpu_custom_call.1} parent=1 // pred_check
      _
    $region3: #{tpu_custom_call.1} parent=1 // pred_check_branch
      %13 = sbr.rel (0) target = $region5
    $region4: #{tpu_custom_call.1} parent=1 // pred_region
      %s15 = ssub.s32 128, 128
      %16 = vsyncadd [#allocation3], %s15
      %s17 = sshll.u32 [#allocation2], 4
      %s18 = int_to_ptr.vmem [resolvable:$true] %s17
      %23 = dma.hbm_to_vmem [thread:$0]  %s0, 128, %s18, [#allocation3], 64, 64, 4
    $region5: #{tpu_custom_call.1} parent=1 // pred_fallthru
      _
    // Predicated region
    $region6: #{tpu_custom_call.1} parent=1 // pred_check
      _
    $region7: #{tpu_custom_call.1} parent=1 // pred_check_branch
      %25 = sbr.rel (0) target = $region9
    $region8: #{tpu_custom_call.1} parent=1 // pred_region
      %s27 = ssub.s32 1024, 1024
      %28 = vsyncadd [#allocation6], %s27
      %s29 = sshll.u32 [#allocation5], 4
      %s30 = int_to_ptr.vmem [resolvable:$true] %s29
      %35 = dma.hbm_to_vmem [thread:$0]  %s1, 1024, %s30, [#allocation6], 64, 64, 4
    $region9: #{tpu_custom_call.1} parent=1 // pred_fallthru
      _
    // Predicated region
    $region10: #{tpu_custom_call.1} parent=1 // pred_check
      _
    $region11: #{tpu_custom_call.1} parent=1 // pred_check_branch
      %37 = sbr.rel (0) target = $region13
    $region12: #{tpu_custom_call.1} parent=1 // pred_region
      _
    $region13: #{tpu_custom_call.1} parent=1 // pred_fallthru
      _
    // Predicated region
    $region14: #{tpu_custom_call.1} parent=1 // pred_check
      _
    $region15: #{tpu_custom_call.1} parent=1 // pred_check_branch
      %39 = sbr.rel (0) target = $region17
    $region16: #{tpu_custom_call.1} parent=1 // pred_region
      _
    $region17: #{tpu_custom_call.1} parent=1 // pred_fallthru
      _
    // Predicated region
    $region18: #{tpu_custom_call.1} parent=1 // pred_check
      _
    $region19: #{tpu_custom_call.1} parent=1 // pred_check_branch
      %41 = sbr.rel (0) target = $region21
    $region20: #{tpu_custom_call.1} parent=1 // pred_region
      %42 = dma.done [#allocation3], 128
    $region21: #{tpu_custom_call.1} parent=1 // pred_fallthru
      _
    // Predicated region
    $region22: #{tpu_custom_call.1} parent=1 // pred_check
      _
    $region23: #{tpu_custom_call.1} parent=1 // pred_check_branch
      %44 = sbr.rel (0) target = $region25
    $region24: #{tpu_custom_call.1} parent=1 // pred_region
      %45 = dma.done [#allocation6], 1024
    $region25: #{tpu_custom_call.1} parent=1 // pred_fallthru
      _
    %p47 = scmp.eq.s32.totalorder 0, 0
    // Predicated region
    $region26: #{tpu_custom_call.1} parent=1 // pred_check
      %p48 = pneg %p47
    $region27: #{tpu_custom_call.1} parent=1 // pred_check_branch
      %50 = sbr.rel (%p48) target = $region29
    $region28: #{tpu_custom_call.1} parent=1 // pred_region
      %51 = vst [vmem:[#allocation7] sm:$0xff] 0.0
      %52 = vst [vmem:[#allocation7 + $0x8] sm:$0xff] 0.0
    $region29: #{tpu_custom_call.1} parent=1 // pred_fallthru
      _
    %v53 = vld [vmem:[#allocation7] sm:$0xff]
    %v54 = vld [vmem:[#allocation7 + $0x8] sm:$0xff]
    %v55 = vld [vmem:[#allocation2] sm:$0xf]
    %v56 = vld [vmem:[#allocation2 + $0x4] sm:$0xf]
    %v57 = vld [vmem:[#allocation5] sm:$0xf]
    %v58 = vld [vmem:[#allocation5 + $0x4] sm:$0xf]
    %v59 = vld [vmem:[#allocation5 + $0x8] sm:$0xf]
    %v60 = vld [vmem:[#allocation5 + $0xc] sm:$0xf]
    %v61 = vld [vmem:[#allocation5 + $0x10] sm:$0xf]
    %v62 = vld [vmem:[#allocation5 + $0x14] sm:$0xf]
    %v63 = vld [vmem:[#allocation5 + $0x18] sm:$0xf]
    %v64 = vld [vmem:[#allocation5 + $0x1c] sm:$0xf]
    %v65 = vld [vmem:[#allocation5 + $0x20] sm:$0xf]
    %v66 = vld [vmem:[#allocation5 + $0x24] sm:$0xf]
    %v67 = vld [vmem:[#allocation5 + $0x28] sm:$0xf]
    %v68 = vld [vmem:[#allocation5 + $0x2c] sm:$0xf]
    %v69 = vld [vmem:[#allocation5 + $0x30] sm:$0xf]
    %v70 = vld [vmem:[#allocation5 + $0x34] sm:$0xf]
    %v71 = vld [vmem:[#allocation5 + $0x38] sm:$0xf]
    %v72 = vld [vmem:[#allocation5 + $0x3c] sm:$0xf]
    %v75 = vunpack.c.l.b16 %v55
    %v76 = vunpack.c.l.b16 %v56
    %v77 = vpack.c.b16 %v76, %v75
    %v95 = vunpack.c.l.b16 %v57
    %v96 = vunpack.c.l.b16 %v58
    %v97 = vunpack.c.l.b16 %v59
    %v98 = vunpack.c.l.b16 %v60
    %v99 = vunpack.c.l.b16 %v61
    %v100 = vunpack.c.l.b16 %v62
    %v101 = vunpack.c.l.b16 %v63
    %v102 = vunpack.c.l.b16 %v64
    %v103 = vunpack.c.l.b16 %v65
    %v104 = vunpack.c.l.b16 %v66
    %v105 = vunpack.c.l.b16 %v67
    %v106 = vunpack.c.l.b16 %v68
    %v107 = vunpack.c.l.b16 %v69
    %v108 = vunpack.c.l.b16 %v70
    %v109 = vunpack.c.l.b16 %v71
    %v110 = vunpack.c.l.b16 %v72
    %v111 = vpack.c.b16 %v96, %v95
    %v112 = vpack.c.b16 %v98, %v97
    %v113 = vpack.c.b16 %v100, %v99
    %v114 = vpack.c.b16 %v102, %v101
    %v115 = vpack.c.b16 %v104, %v103
    %v116 = vpack.c.b16 %v106, %v105
    %v117 = vpack.c.b16 %v108, %v107
    %v118 = vpack.c.b16 %v110, %v109
    %127 = vmatprep.subr.bf16.mxu0 0
    %128 = vmatpush1.bf16.msra.mxu0 %v111
    %129 = vmatprep.subr.bf16.mxu0 0
    %130 = vmatpush1.bf16.msra.mxu0 %v112
    %131 = vmatprep.subr.bf16.mxu0 0
    %132 = vmatpush1.bf16.msra.mxu0 %v113
    %133 = vmatprep.subr.bf16.mxu0 0
    %134 = vmatpush1.bf16.msra.mxu0 %v114
    %135 = vmatprep.subr.bf16.mxu0 0
    %136 = vmatpush1.bf16.msra.mxu0 %v115
    %137 = vmatprep.subr.bf16.mxu0 0
    %138 = vmatpush1.bf16.msra.mxu0 %v116
    %139 = vmatprep.subr.bf16.mxu0 0
    %140 = vmatpush1.bf16.msra.mxu0 %v117
    %141 = vmatprep.subr.bf16.mxu0 0
    %142 = vmatpush1.bf16.msra.mxu0 %v118
    %143 = vmatprep.subr.bf16.mxu0 0
    %144 = vmatpush1.bf16.msra.mxu0 0
    %145 = vmatprep.subr.bf16.mxu0 0
    %146 = vmatpush1.bf16.msra.mxu0 0
    %147 = vmatprep.subr.bf16.mxu0 0
    %148 = vmatpush1.bf16.msra.mxu0 0
    %149 = vmatprep.subr.bf16.mxu0 0
    %150 = vmatpush1.bf16.msra.mxu0 0
    %151 = vmatprep.subr.bf16.mxu0 0
    %152 = vmatpush1.bf16.msra.mxu0 0
    %153 = vmatprep.subr.bf16.mxu0 0
    %154 = vmatpush1.bf16.msra.mxu0 0
    %155 = vmatprep.subr.bf16.mxu0 0
    %156 = vmatpush1.bf16.msra.mxu0 0
    %157 = vmatprep.subr.bf16.mxu0 0
    %158 = vmatpush1.bf16.msra.mxu0 0
    %159 = vmatprep.mubr.bf16.mxu0 0
    %160 = vmatmul.mubr.bf16.gmra.mrb[0].mxu0 %v77
    %v161 = vpop.f32.mrb[0].mxu0
    %v162 = vadd.f32 0.0, %v161
    %v163 = vpop.f32.mrb[0].mxu0
    %v164 = vpop.f32.mrb[0].mxu0
    %v165 = vadd.f32 0.0, %v164
    %v166 = vpop.f32.mrb[0].mxu0
    %167 = vdwg.mxu0
    %v168 = vadd.f32 %v53, %v162
    %v169 = vadd.f32 %v54, %v165
    %170 = vst [vmem:[#allocation7] sm:$0xff] %v168
    %171 = vst [vmem:[#allocation7 + $0x8] sm:$0xff] %v169
    // Predicated region
    $region30: #{tpu_custom_call.1} parent=1 // pred_check
      %p172 = pneg %p47
    $region31: #{tpu_custom_call.1} parent=1 // pred_check_branch
      %174 = sbr.rel (%p172) target = $region33
    $region32: #{tpu_custom_call.1} parent=1 // pred_region
      %v175 = vld [vmem:[#allocation7] sm:$0xff]
      %v176 = vld [vmem:[#allocation7 + $0x8] sm:$0xff]
      %v177 = vadd.f32 %v175, %v176
      %v178 = vrot.slane %v177, 4
      %v179 = vadd.f32 %v177, %v178
      %v180 = vrot.slane %v179, 2
      %v181 = vadd.f32 %v179, %v180
      %v182 = vrot.slane %v181, 1
      %v183 = vadd.f32 %v181, %v182
      %v184 = vmul.f32 %v175, %v175
      %v185 = vmul.f32 %v176, %v176
      %v186 = vadd.f32 %v184, %v185
      %v187 = vrot.slane %v186, 4
      %v188 = vadd.f32 %v186, %v187
      %v189 = vrot.slane %v188, 2
      %v190 = vadd.f32 %v188, %v189
      %v191 = vrot.slane %v190, 1
      %v192 = vadd.f32 %v190, %v191
      %v193 = vmul.f32 %v183, 0.125
      %v194 = vmul.f32 %v192, 0.125
      %v195 = vmul.f32 %v193, %v193
      %v196 = vsub.f32 %v194, %v195
      %v197 = vmax.f32 %v196, 0.0
      %v198 = vadd.f32 %v197, 1e-05
      %v199 = vrsqrt.pop %v198
      %v200 = vld [vmem:[%s2] sm:$0x1]
      %v201 = vmul.f32 %v200, %v199
      %v202 = vld [vmem:[%s3] sm:$0x1]
      %v203 = vmul.f32 %v193, %v201
      %v204 = vsub.f32 %v202, %v203
      %v206 = vlaneseq
      %v207 = vshrl.u32 %v206, 7
      %v208 = vsub.s32 0, %v207
      %v209 = vrot.slane %v201, %v208
      %v211 = vmul.f32 %v175, %v209
      %v212 = vmul.f32 %v176, %v209
      %v214 = vlaneseq
      %v215 = vshrl.u32 %v214, 7
      %v216 = vsub.s32 0, %v215
      %v217 = vrot.slane %v204, %v216
      %v219 = vadd.f32 %v211, %v217
      %v220 = vadd.f32 %v212, %v217
      %v221 = vmax.f32 %v219, 0.0
      %v222 = vmax.f32 %v220, 0.0
      %223 = vst [vmem:[#allocation7] sm:$0xff] %v221
      %224 = vst [vmem:[#allocation7 + $0x8] sm:$0xff] %v222
    $region33: #{tpu_custom_call.1} parent=1 // pred_fallthru
      _
    // Predicated region
    $region34: #{tpu_custom_call.1} parent=1 // pred_check
      _
    $region35: #{tpu_custom_call.1} parent=1 // pred_check_branch
      %226 = sbr.rel (0) target = $region37
    $region36: #{tpu_custom_call.1} parent=1 // pred_region
      %s228 = ssub.s32 256, 256
      %229 = vsyncadd [#allocation4], %s228
      %s230 = sshll.u32 [#allocation7], 4
      %s231 = int_to_ptr.vmem [resolvable:$true] %s230
      %236 = dma.vmem_to_hbm [thread:$0]  %s231, 256, %s4, [#allocation4], 128, 128, 8
    $region37: #{tpu_custom_call.1} parent=1 // pred_fallthru
      _
    // Predicated region
    $region38: #{tpu_custom_call.1} parent=1 // pred_check
      _
    $region39: #{tpu_custom_call.1} parent=1 // pred_check_branch
      %238 = sbr.rel (0) target = $region41
    $region40: #{tpu_custom_call.1} parent=1 // pred_region
      %239 = dma.done [#allocation4], 256
    $region41: #{tpu_custom_call.1} parent=1 // pred_fallthru
      _
    %240 = vsyncpa [#allocation3], 1
    %241 = vsyncpa [#allocation6], 1
    %242 = vsyncpa [#allocation4], 1

</llo_original>
